<compile_context>
chip_gen: v6e
topology: v6e:2x2x1
jax: 0.10.0
libtpu: 0.0.40
codegen_flags: <defaults>
</compile_context>

<pallas_src>
import functools

import jax
import jax.numpy as jnp
from jax.experimental import pallas as pl
from jax.experimental.pallas import tpu as pltpu


def _round_up(x, m):
    return (x + m - 1) // m * m


def mlm_head_kernel(x_ref, w1_ref, b1_ref, g_ref, beta_ref, wd_ref, bd_ref,
                    o_ref, h_ref, *, eps):
    j = pl.program_id(1)

    # --- transform: dense(H->H)+bias, erf-gelu, LayerNorm ------------------
    # Computed once per token tile (vocab axis is the inner grid axis) and
    # cached in VMEM scratch so it is not redone for every vocab tile.
    @pl.when(j == 0)
    def _():
        h = jnp.dot(x_ref[...], w1_ref[...],
                    preferred_element_type=jnp.float32)
        h = h + b1_ref[...]
        # exact gelu (erf form) -- matches torch.nn.functional.gelu default
        h = 0.5 * h * (1.0 + jax.lax.erf(h * 0.7071067811865476))
        # LayerNorm over hidden dim (biased variance, like torch), f32 math
        mean = jnp.mean(h, axis=-1, keepdims=True)
        var = jnp.mean((h - mean) * (h - mean), axis=-1, keepdims=True)
        h = (h - mean) * jax.lax.rsqrt(var + eps)
        h = h * g_ref[...] + beta_ref[...]
        h_ref[...] = h.astype(h_ref.dtype)

    # --- decoder tile: (tm, H) @ (H, tn), then add vocab-bias tile ----------
    y = jnp.dot(h_ref[...], wd_ref[...], preferred_element_type=jnp.float32)
    o_ref[...] = (y + bd_ref[...]).astype(o_ref.dtype)


def mlm_head(x, params, *, eps=1e-12, tm=256, tn=512):
    """x: [B, S, H] float -> logits [B, S, V] float32."""
    B, S, H = x.shape
    w1_t = params["dense_w_t"]                      # (H, H)  bf16, pre-transposed
    b1 = params["dense_b"].reshape(1, H).astype(jnp.float32)
    gamma = params["ln_g"].reshape(1, H).astype(jnp.float32)
    beta = params["ln_b"].reshape(1, H).astype(jnp.float32)
    wd_t = params["dec_w_t"]                        # (H, V)  bf16, pre-transposed
    V = wd_t.shape[1]
    bd = params["dec_bias"].reshape(1, V).astype(jnp.float32)

    M = B * S
    x2 = x.reshape(M, H).astype(jnp.bfloat16)

    # Token tiling: clamp tm for small inputs, pad M up to a tile multiple.
    tm = min(tm, _round_up(M, 8))
    Mp = _round_up(M, tm)
    if Mp != M:
        x2 = jnp.pad(x2, ((0, Mp - M), (0, 0)))

    # Vocab tiling: tn a multiple of 128 (lane-dense stores); pad V if needed.
    tn = min(tn, _round_up(V, 128))
    Vp = _round_up(V, tn)
    if Vp != V:
        wd_t = jnp.pad(wd_t, ((0, 0), (0, Vp - V)))
        bd = jnp.pad(bd, ((0, 0), (0, Vp - V)))

    grid = (Mp // tm, Vp // tn)
    kernel = functools.partial(mlm_head_kernel, eps=float(eps))

    out = pl.pallas_call(
        kernel,
        out_shape=jax.ShapeDtypeStruct((Mp, Vp), jnp.float32),
        grid_spec=pltpu.PrefetchScalarGridSpec(
            num_scalar_prefetch=0,
            grid=grid,
            in_specs=[
                pl.BlockSpec((tm, H), lambda i, j: (i, 0)),   # x token tile
                pl.BlockSpec((H, H), lambda i, j: (0, 0)),    # dense W^T
                pl.BlockSpec((1, H), lambda i, j: (0, 0)),    # dense bias
                pl.BlockSpec((1, H), lambda i, j: (0, 0)),    # LN gamma
                pl.BlockSpec((1, H), lambda i, j: (0, 0)),    # LN beta
                pl.BlockSpec((H, tn), lambda i, j: (0, j)),   # decoder W^T tile
                pl.BlockSpec((1, tn), lambda i, j: (0, j)),   # vocab bias tile
            ],
            out_specs=pl.BlockSpec((tm, tn), lambda i, j: (i, j)),
            # cached LN(gelu(dense(x))) activations for the current token tile
            scratch_shapes=[pltpu.VMEM((tm, H), jnp.bfloat16)],
        ),
        compiler_params=pltpu.CompilerParams(
            dimension_semantics=("parallel", "arbitrary")),
    )(x2, w1_t, b1, gamma, beta, wd_t, bd)

    return out[:M, :V].reshape(B, S, V)


def init_params(key, hidden_size, vocab_size):
    k1, k2, k3 = jax.random.split(key, 3)
    scale_h = 1.0 / jnp.sqrt(hidden_size)
    # torch layout: nn.Linear(H, H).weight is (out, in); decoder is (V, H).
    dense_w = jax.random.normal(k1, (hidden_size, hidden_size),
                                jnp.float32) * scale_h
    dec_w = jax.random.normal(k3, (vocab_size, hidden_size),
                              jnp.float32) * scale_h
    return {
        # Pre-transposed to [in, out] and bf16-cast ONCE at setup time so no
        # per-call HBM transpose / cast is paid.
        "dense_w_t": dense_w.T.astype(jnp.bfloat16),
        "dense_b": jax.random.normal(k2, (hidden_size,), jnp.float32) * 0.02,
        "ln_g": jnp.ones((hidden_size,), jnp.float32),
        "ln_b": jnp.zeros((hidden_size,), jnp.float32),
        "dec_w_t": dec_w.T.astype(jnp.bfloat16),
        "dec_bias": jnp.zeros((vocab_size,), jnp.float32),
    }


def reference(x, params, eps=1e-12):
    # Pure-JAX reference mirroring the kernel's bf16-operand / f32-accumulate
    # matmul precision (gelu/LN in f32).
    B, S, H = x.shape
    xb = x.reshape(-1, H).astype(jnp.bfloat16)
    h = jnp.dot(xb, params["dense_w_t"], preferred_element_type=jnp.float32)
    h = h + params["dense_b"]
    h = 0.5 * h * (1.0 + jax.lax.erf(h * 0.7071067811865476))
    mean = h.mean(-1, keepdims=True)
    var = ((h - mean) ** 2).mean(-1, keepdims=True)
    h = (h - mean) * jax.lax.rsqrt(var + eps)
    h = h * params["ln_g"] + params["ln_b"]
    hb = h.astype(jnp.bfloat16)
    y = jnp.dot(hb, params["dec_w_t"], preferred_element_type=jnp.float32)
    y = y + params["dec_bias"]
    return y.reshape(B, S, -1)


if __name__ == "__main__":
    B, S, H, V = 2, 8, 32, 384
    key = jax.random.PRNGKey(0)
    kx, kp = jax.random.split(key)
    x = jax.random.normal(kx, (B, S, H), jnp.float32)
    params = init_params(kp, H, V)

    # tm is clamped to the (tiny) token count; tn=128 exercises 3 vocab tiles.
    out = mlm_head(x, params, tm=128, tn=128)
    out = jax.block_until_ready(out)

    ref = reference(x, params)
    assert out.shape == (B, S, V)
    max_err = float(jnp.max(jnp.abs(out - ref)))
    assert jnp.allclose(out, ref, atol=2e-2, rtol=2e-2), max_err
    print("KERNEL_OK")
</pallas_src>

<mosaic_0001>
module attributes {stable_mosaic.version = 11 : i64} {
  func.func @mlm_head_kernel(%arg0: i32, %arg1: i32, %arg2: memref<16x32xbf16, #tpu.memory_space<vmem>>, %arg3: memref<32x32xbf16, #tpu.memory_space<vmem>>, %arg4: memref<1x32xf32, #tpu.memory_space<vmem>>, %arg5: memref<1x32xf32, #tpu.memory_space<vmem>>, %arg6: memref<1x32xf32, #tpu.memory_space<vmem>>, %arg7: memref<32x128xbf16, #tpu.memory_space<vmem>>, %arg8: memref<1x128xf32, #tpu.memory_space<vmem>>, %arg9: memref<16x128xf32, #tpu.memory_space<vmem>>, %arg10: memref<16x32xbf16, #tpu.memory_space<vmem>>) attributes {dimension_semantics = [#tpu.dimension_semantics<parallel>, #tpu.dimension_semantics<arbitrary>], iteration_bounds = array<i64: 1, 3>, scalar_prefetch = 0 : i64, scratch_operands = 1 : i64, tpu.core_type = #tpu.core_type<tc>, window_params = [{transform_indices = @transform_0, window_bounds = array<i64: 16, 32>}, {pipeline_mode = #tpu.pipeline_mode<synchronous>, transform_indices = @transform_1, window_bounds = array<i64: 32, 32>}, {pipeline_mode = #tpu.pipeline_mode<synchronous>, transform_indices = @transform_2, window_bounds = array<i64: 1, 32>}, {pipeline_mode = #tpu.pipeline_mode<synchronous>, transform_indices = @transform_3, window_bounds = array<i64: 1, 32>}, {pipeline_mode = #tpu.pipeline_mode<synchronous>, transform_indices = @transform_4, window_bounds = array<i64: 1, 32>}, {transform_indices = @transform_5, window_bounds = array<i64: 32, 128>}, {transform_indices = @transform_6, window_bounds = array<i64: 1, 128>}, {transform_indices = @transform_7, window_bounds = array<i64: 16, 128>}]} {
    %c0_i32 = arith.constant 0 : i32
    %0 = arith.cmpi eq, %arg1, %c0_i32 : i32
    %1 = arith.extui %0 : i1 to i32
    %c0_i32_0 = arith.constant 0 : i32
    %2 = arith.cmpi ne, %1, %c0_i32_0 : i32
    scf.if %2 {
      %c0_8 = arith.constant 0 : index
      %c0_9 = arith.constant 0 : index
      %10 = vector.load %arg2[%c0_8, %c0_9] : memref<16x32xbf16, #tpu.memory_space<vmem>>, vector<16x32xbf16>
      %c0_10 = arith.constant 0 : index
      %c0_11 = arith.constant 0 : index
      %11 = vector.load %arg3[%c0_10, %c0_11] : memref<32x32xbf16, #tpu.memory_space<vmem>>, vector<32x32xbf16>
      %cst_12 = arith.constant dense<0.000000e+00> : vector<16x32xf32>
      %12 = tpu.matmul %10, %11, %cst_12 {dimension_numbers = #tpu.dot_dimension_numbers<[1], [0], [0], [1], [0, 0, 1, 1], [], []>} : vector<16x32xbf16>, vector<32x32xbf16>, vector<16x32xf32> -> vector<16x32xf32>
      %c0_13 = arith.constant 0 : index
      %c0_14 = arith.constant 0 : index
      %13 = vector.load %arg4[%c0_13, %c0_14] : memref<1x32xf32, #tpu.memory_space<vmem>>, vector<1x32xf32>
      %14 = vector.broadcast %13 : vector<1x32xf32> to vector<16x32xf32>
      %15 = arith.addf %12, %14 : vector<16x32xf32>
      %cst_15 = arith.constant 5.000000e-01 : f32
      %16 = vector.broadcast %cst_15 : f32 to vector<16x32xf32>
      %17 = arith.mulf %16, %15 : vector<16x32xf32>
      %cst_16 = arith.constant 0.707106769 : f32
      %18 = vector.broadcast %cst_16 : f32 to vector<16x32xf32>
      %19 = arith.mulf %15, %18 : vector<16x32xf32>
      %20 = math.erf %19 : vector<16x32xf32>
      %cst_17 = arith.constant 1.000000e+00 : f32
      %21 = vector.broadcast %cst_17 : f32 to vector<16x32xf32>
      %22 = arith.addf %21, %20 : vector<16x32xf32>
      %23 = arith.mulf %17, %22 : vector<16x32xf32>
      %cst_18 = arith.constant dense<0.000000e+00> : vector<16xf32>
      %24 = vector.multi_reduction <add>, %23, %cst_18 [1] : vector<16x32xf32> to vector<16xf32>
      %25 = vector.shape_cast %24 : vector<16xf32> to vector<16x1xf32>
      %cst_19 = arith.constant 3.200000e+01 : f32
      %26 = vector.broadcast %cst_19 : f32 to vector<16x1xf32>
      %27 = arith.divf %25, %26 : vector<16x1xf32>
      %28 = vector.broadcast %27 : vector<16x1xf32> to vector<16x32xf32>
      %29 = arith.subf %23, %28 : vector<16x32xf32>
      %30 = vector.broadcast %27 : vector<16x1xf32> to vector<16x32xf32>
      %31 = arith.subf %23, %30 : vector<16x32xf32>
      %32 = arith.mulf %29, %31 : vector<16x32xf32>
      %cst_20 = arith.constant dense<0.000000e+00> : vector<16xf32>
      %33 = vector.multi_reduction <add>, %32, %cst_20 [1] : vector<16x32xf32> to vector<16xf32>
      %34 = vector.shape_cast %33 : vector<16xf32> to vector<16x1xf32>
      %cst_21 = arith.constant 3.200000e+01 : f32
      %35 = vector.broadcast %cst_21 : f32 to vector<16x1xf32>
      %36 = arith.divf %34, %35 : vector<16x1xf32>
      %37 = vector.broadcast %27 : vector<16x1xf32> to vector<16x32xf32>
      %38 = arith.subf %23, %37 : vector<16x32xf32>
      %cst_22 = arith.constant 9.99999996E-13 : f32
      %39 = vector.broadcast %cst_22 : f32 to vector<16x1xf32>
      %40 = arith.addf %36, %39 : vector<16x1xf32>
      %41 = math.rsqrt %40 : vector<16x1xf32>
      %42 = vector.broadcast %41 : vector<16x1xf32> to vector<16x32xf32>
      %43 = arith.mulf %38, %42 : vector<16x32xf32>
      %c0_23 = arith.constant 0 : index
      %c0_24 = arith.constant 0 : index
      %44 = vector.load %arg5[%c0_23, %c0_24] : memref<1x32xf32, #tpu.memory_space<vmem>>, vector<1x32xf32>
      %45 = vector.broadcast %44 : vector<1x32xf32> to vector<16x32xf32>
      %46 = arith.mulf %43, %45 : vector<16x32xf32>
      %c0_25 = arith.constant 0 : index
      %c0_26 = arith.constant 0 : index
      %47 = vector.load %arg6[%c0_25, %c0_26] : memref<1x32xf32, #tpu.memory_space<vmem>>, vector<1x32xf32>
      %48 = vector.broadcast %47 : vector<1x32xf32> to vector<16x32xf32>
      %49 = arith.addf %46, %48 : vector<16x32xf32>
      %50 = arith.truncf %49 : vector<16x32xf32> to vector<16x32xbf16>
      %c0_27 = arith.constant 0 : index
      %c0_28 = arith.constant 0 : index
      %51 = vector.load %arg10[%c0_27, %c0_28] : memref<16x32xbf16, #tpu.memory_space<vmem>>, vector<16x32xbf16>
      tpu.vector_store %arg10[%c0_27, %c0_28], %50 {strides = array<i32>} : memref<16x32xbf16, #tpu.memory_space<vmem>>, vector<16x32xbf16>,
    } else {
    }
    %c0 = arith.constant 0 : index
    %c0_1 = arith.constant 0 : index
    %3 = vector.load %arg10[%c0, %c0_1] : memref<16x32xbf16, #tpu.memory_space<vmem>>, vector<16x32xbf16>
    %c0_2 = arith.constant 0 : index
    %c0_3 = arith.constant 0 : index
    %4 = vector.load %arg7[%c0_2, %c0_3] : memref<32x128xbf16, #tpu.memory_space<vmem>>, vector<32x128xbf16>
    %cst = arith.constant dense<0.000000e+00> : vector<16x128xf32>
    %5 = tpu.matmul %3, %4, %cst {dimension_numbers = #tpu.dot_dimension_numbers<[1], [0], [0], [1], [0, 0, 1, 1], [], []>} : vector<16x32xbf16>, vector<32x128xbf16>, vector<16x128xf32> -> vector<16x128xf32>
    %c0_4 = arith.constant 0 : index
    %c0_5 = arith.constant 0 : index
    %6 = vector.load %arg8[%c0_4, %c0_5] : memref<1x128xf32, #tpu.memory_space<vmem>>, vector<1x128xf32>
    %7 = vector.broadcast %6 : vector<1x128xf32> to vector<16x128xf32>
    %8 = arith.addf %5, %7 : vector<16x128xf32>
    %c0_6 = arith.constant 0 : index
    %c0_7 = arith.constant 0 : index
    %9 = vector.load %arg9[%c0_6, %c0_7] : memref<16x128xf32, #tpu.memory_space<vmem>>, vector<16x128xf32>
    tpu.vector_store %arg9[%c0_6, %c0_7], %8 {strides = array<i32>} : memref<16x128xf32, #tpu.memory_space<vmem>>, vector<16x128xf32>,
    return
  }
  func.func @transform_0(%arg0: i32, %arg1: i32) -> (i32, i32) {
    %c0_i32 = arith.constant 0 : i32
    %c0_i32_0 = arith.constant 0 : i32
    return %arg0, %c0_i32 : i32, i32
  }
  func.func @transform_1(%arg0: i32, %arg1: i32) -> (i32, i32) {
    %c0_i32 = arith.constant 0 : i32
    %c0_i32_0 = arith.constant 0 : i32
    %c0_i32_1 = arith.constant 0 : i32
    return %c0_i32, %c0_i32_0 : i32, i32
  }
  func.func @transform_2(%arg0: i32, %arg1: i32) -> (i32, i32) {
    %c0_i32 = arith.constant 0 : i32
    %c0_i32_0 = arith.constant 0 : i32
    %c0_i32_1 = arith.constant 0 : i32
    return %c0_i32, %c0_i32_0 : i32, i32
  }
  func.func @transform_3(%arg0: i32, %arg1: i32) -> (i32, i32) {
    %c0_i32 = arith.constant 0 : i32
    %c0_i32_0 = arith.constant 0 : i32
    %c0_i32_1 = arith.constant 0 : i32
    return %c0_i32, %c0_i32_0 : i32, i32
  }
  func.func @transform_4(%arg0: i32, %arg1: i32) -> (i32, i32) {
    %c0_i32 = arith.constant 0 : i32
    %c0_i32_0 = arith.constant 0 : i32
    %c0_i32_1 = arith.constant 0 : i32
    return %c0_i32, %c0_i32_0 : i32, i32
  }
  func.func @transform_5(%arg0: i32, %arg1: i32) -> (i32, i32) {
    %c0_i32 = arith.constant 0 : i32
    %c0_i32_0 = arith.constant 0 : i32
    return %c0_i32, %arg1 : i32, i32
  }
  func.func @transform_6(%arg0: i32, %arg1: i32) -> (i32, i32) {
    %c0_i32 = arith.constant 0 : i32
    %c0_i32_0 = arith.constant 0 : i32
    return %c0_i32, %arg1 : i32, i32
  }
  func.func @transform_7(%arg0: i32, %arg1: i32) -> (i32, i32) {
    %c0_i32 = arith.constant 0 : i32
    return %arg0, %arg1 : i32, i32
  }
}

</mosaic_0001>

<llo_original>
// kernel: tpu_custom_call.1
$region0: #{tpu_custom_call.1}
  #allocation0 [shape = 'u32[]', space=smem, size = 0x4, offset = 0x4, fixed_abs, tag = 'smem constant byte address 0x4 - core index']
  #allocation1 [shape = 'u32[144,128]{1,0:T(1,128)}', space=vmem, size = 0x12000, scoped, tag = 'internal scratch']
  #allocation2 [shape = 'bf16[16,32]{1,0:T(8,128)(2,1)}', space=vmem, size = 0x1000, scoped, tag = 'scratch operand']
  %s0 = inlined_call_operand.hbm [shape: bf16[16,32], index: 0, kind: input, shape index: {}]
  %s1 = inlined_call_operand.hbm [shape: bf16[32,32], index: 1, kind: input, shape index: {}]
  %s2 = inlined_call_operand.vmem [shape: f32[1,32], index: 2, kind: input, shape index: {}]
  %s3 = inlined_call_operand.vmem [shape: f32[1,32], index: 3, kind: input, shape index: {}]
  %s4 = inlined_call_operand.vmem [shape: f32[1,32], index: 4, kind: input, shape index: {}]
  %s5 = inlined_call_operand.hbm [shape: bf16[32,384], index: 5, kind: input, shape index: {}]
  %s6 = inlined_call_operand.vmem [shape: f32[1,384], index: 6, kind: input, shape index: {}]
  %s7 = inlined_call_operand.hbm [shape: f32[16,384], index: 7, kind: output, shape index: {}]
  %s8 = sld [smem:[#allocation0]]
  $region77: #{tpu_custom_call.1} parent=0
    _
  %s10 = ssub.s32 1, %s8
  %s11 = scalar_select 0, %s10, %s8
  $region1: #{tpu_custom_call.1} parent=0
    #allocation3 [shape = 'u8[4096]{0}', space=vmem, size = 0x1000, scoped, tag = 'input window, operand 0, single buffered']
    #allocation4 [shape = 's32[2]{0}', space=sflag, size = 0x8, scoped, tag = 'scoped memory for tpu_custom_call.1']
    #allocation5 [shape = 's32[2]{0}', space=sflag, size = 0x8, scoped, tag = 'scoped memory for tpu_custom_call.1']
    #allocation6 [shape = 'u8[8192]{0}', space=vmem, size = 0x2000, scoped, tag = 'input window, operand 1, single buffered']
    #allocation7 [shape = 's32[1]{0}', space=sflag, size = 0x4, scoped, tag = 'scoped memory for tpu_custom_call.1']
    #allocation8 [shape = 'u8[16384]{0}', space=vmem, size = 0x4000, scoped, tag = 'input window, operand 5']
    #allocation9 [shape = 'u8[16384]{0}', space=vmem, size = 0x4000, scoped, tag = 'output window, operand 0']
    %12 = vsyncpa [#allocation4], 0
    %13 = vsyncpa [#allocation7], 0
    %14 = vsyncpa [#allocation5], 0
    %s15 = scalar_lea.sflag [#allocation5], 1
    %16 = vsyncpa %s15, 0
    loop: start=0, step=1, limit=5
    $region2: #{tpu_custom_call.1} parent=1 // loop_pre_header
      _
    $region3: #{tpu_custom_call.1} parent=1 // loop_header
      %s18 = sphi 0, %s22
      %p19 = scmp.ge.s32.totalorder %s18, 5
      %s25 = sphi 0, %s37
      %s26 = sphi 0, %s33
      %s27 = sphi 0, %s25
      %s28 = sphi 0, %s26
      %s29 = sphi 0, %s27
      %s30 = sphi 0, %s28
      %s40 = sphi 0, %s42
      %s43 = sphi 0, %s40
      %s44 = sphi 0, %s43
      %s60 = sphi 0, %s44
      %s64 = sphi 0, %s64
      %s66 = sphi 0, %s64
      %s67 = sphi 0, %s66
      %s81 = sphi 0, %s67
      %s85 = sphi 0, %s85
      %s87 = sphi 0, %s85
      %s88 = sphi 0, %s87
      %s102 = sphi 0, %s88
      %s106 = sphi 0, %s106
      %s108 = sphi 0, %s106
      %s109 = sphi 0, %s108
      %s123 = sphi 0, %s109
      %s127 = sphi 0, %s127
      %s129 = sphi 0, %s127
      %s130 = sphi 0, %s129
      %s144 = sphi 0, %s130
      %s150 = sphi 0, %s152
      %s153 = sphi 0, %s150
      %s154 = sphi 0, %s153
      %s170 = sphi 0, %s154
      %s176 = sphi 0, %s178
      %s179 = sphi 0, %s176
      %s180 = sphi 0, %s179
      %s196 = sphi 0, %s180
      %s204 = sphi 0, %s206
      %s207 = sphi 0, %s204
      %s208 = sphi 0, %s207
      %s224 = sphi 0, %s208
    $region4: #{tpu_custom_call.1} parent=1 // loop_header_branch
      %21 = sbr.rel (%p19) target = $region8
    $region5: #{tpu_custom_call.1} parent=1 // loop_body
      %s23 = ssub.s32 %s18, 1
      %s24 = ssub.s32 %s18, 2
      %s31 = sadd.s32 1, %s26
      %p32 = scmp.ge.s32.totalorder %s31, 3
      %s33 = scalar_select %p32, 0, %s31
      %s34 = sadd.s32 1, %s25
      %s35 = scalar_select %p32, %s34, %s25
      %p36 = scmp.ge.s32.totalorder %s35, 1
      %s37 = scalar_select %p36, 0, %s35
      %s38 = ssub.s32 %s25, %s37
      %p39 = scmp.eq.s32.totalorder %s38, 0
      %s41 = sadd.s32 %s40, 1
      %s42 = scalar_select %p39, %s40, %s41
      %p45 = pneg %p39
      %p46 = scmp.eq.s32.totalorder %s18, 2
      %p47 = por %p45, %p46
      %p48 = scmp.ne.s32.totalorder %s40, %s43
      %p49 = scmp.eq.s32.totalorder %s18, 0
      %p50 = por %p48, %p49
      %p51 = scmp.ne.s32.totalorder %s40, %s43
      %p52 = scmp.eq.s32.totalorder %s23, 2
      %p53 = por %p51, %p52
      %p54 = scmp.ne.s32.totalorder %s43, %s44
      %p55 = scmp.eq.s32.totalorder %s23, 0
      %p56 = por %p54, %p55
      %p57 = scmp.ne.s32.totalorder %s43, %s44
      %p58 = scmp.eq.s32.totalorder %s24, 2
      %p59 = por %p57, %p58
      %p61 = scmp.ne.s32.totalorder %s44, %s60
      %p62 = scmp.eq.s32.totalorder %s24, 0
      %p63 = por %p61, %p62
      %s65 = sadd.s32 %s64, 1
      %p68 = scmp.eq.s32.totalorder %s18, 2
      %p69 = scmp.ne.s32.totalorder %s64, %s66
      %p70 = scmp.eq.s32.totalorder %s18, 0
      %p71 = por %p69, %p70
      %p72 = scmp.ne.s32.totalorder %s64, %s66
      %p73 = scmp.eq.s32.totalorder %s23, 2
      %p74 = por %p72, %p73
      %p75 = scmp.ne.s32.totalorder %s66, %s67
      %p76 = scmp.eq.s32.totalorder %s23, 0
      %p77 = por %p75, %p76
      %p78 = scmp.ne.s32.totalorder %s66, %s67
      %p79 = scmp.eq.s32.totalorder %s24, 2
      %p80 = por %p78, %p79
      %p82 = scmp.ne.s32.totalorder %s67, %s81
      %p83 = scmp.eq.s32.totalorder %s24, 0
      %p84 = por %p82, %p83
      %s86 = sadd.s32 %s85, 1
      %p89 = scmp.eq.s32.totalorder %s18, 2
      %p90 = scmp.ne.s32.totalorder %s85, %s87
      %p91 = scmp.eq.s32.totalorder %s18, 0
      %p92 = por %p90, %p91
      %p93 = scmp.ne.s32.totalorder %s85, %s87
      %p94 = scmp.eq.s32.totalorder %s23, 2
      %p95 = por %p93, %p94
      %p96 = scmp.ne.s32.totalorder %s87, %s88
      %p97 = scmp.eq.s32.totalorder %s23, 0
      %p98 = por %p96, %p97
      %p99 = scmp.ne.s32.totalorder %s87, %s88
      %p100 = scmp.eq.s32.totalorder %s24, 2
      %p101 = por %p99, %p100
      %p103 = scmp.ne.s32.totalorder %s88, %s102
      %p104 = scmp.eq.s32.totalorder %s24, 0
      %p105 = por %p103, %p104
      %s107 = sadd.s32 %s106, 1
      %p110 = scmp.eq.s32.totalorder %s18, 2
      %p111 = scmp.ne.s32.totalorder %s106, %s108
      %p112 = scmp.eq.s32.totalorder %s18, 0
      %p113 = por %p111, %p112
      %p114 = scmp.ne.s32.totalorder %s106, %s108
      %p115 = scmp.eq.s32.totalorder %s23, 2
      %p116 = por %p114, %p115
      %p117 = scmp.ne.s32.totalorder %s108, %s109
      %p118 = scmp.eq.s32.totalorder %s23, 0
      %p119 = por %p117, %p118
      %p120 = scmp.ne.s32.totalorder %s108, %s109
      %p121 = scmp.eq.s32.totalorder %s24, 2
      %p122 = por %p120, %p121
      %p124 = scmp.ne.s32.totalorder %s109, %s123
      %p125 = scmp.eq.s32.totalorder %s24, 0
      %p126 = por %p124, %p125
      %s128 = sadd.s32 %s127, 1
      %p131 = scmp.eq.s32.totalorder %s18, 2
      %p132 = scmp.ne.s32.totalorder %s127, %s129
      %p133 = scmp.eq.s32.totalorder %s18, 0
      %p134 = por %p132, %p133
      %p135 = scmp.ne.s32.totalorder %s127, %s129
      %p136 = scmp.eq.s32.totalorder %s23, 2
      %p137 = por %p135, %p136
      %p138 = scmp.ne.s32.totalorder %s129, %s130
      %p139 = scmp.eq.s32.totalorder %s23, 0
      %p140 = por %p138, %p139
      %p141 = scmp.ne.s32.totalorder %s129, %s130
      %p142 = scmp.eq.s32.totalorder %s24, 2
      %p143 = por %p141, %p142
      %p145 = scmp.ne.s32.totalorder %s130, %s144
      %p146 = scmp.eq.s32.totalorder %s24, 0
      %p147 = por %p145, %p146
      %s148 = ssub.s32 %s26, %s33
      %p149 = scmp.eq.s32.totalorder %s148, 0
      %s151 = sadd.s32 %s150, 1
      %s152 = scalar_select %p149, %s150, %s151
      %p155 = pneg %p149
      %p156 = scmp.eq.s32.totalorder %s18, 2
      %p157 = por %p155, %p156
      %p158 = scmp.ne.s32.totalorder %s150, %s153
      %p159 = scmp.eq.s32.totalorder %s18, 0
      %p160 = por %p158, %p159
      %p161 = scmp.ne.s32.totalorder %s150, %s153
      %p162 = scmp.eq.s32.totalorder %s23, 2
      %p163 = por %p161, %p162
      %p164 = scmp.ne.s32.totalorder %s153, %s154
      %p165 = scmp.eq.s32.totalorder %s23, 0
      %p166 = por %p164, %p165
      %p167 = scmp.ne.s32.totalorder %s153, %s154
      %p168 = scmp.eq.s32.totalorder %s24, 2
      %p169 = por %p167, %p168
      %p171 = scmp.ne.s32.totalorder %s154, %s170
      %p172 = scmp.eq.s32.totalorder %s24, 0
      %p173 = por %p171, %p172
      %s174 = ssub.s32 %s26, %s33
      %p175 = scmp.eq.s32.totalorder %s174, 0
      %s177 = sadd.s32 %s176, 1
      %s178 = scalar_select %p175, %s176, %s177
      %p181 = pneg %p175
      %p182 = scmp.eq.s32.totalorder %s18, 2
      %p183 = por %p181, %p182
      %p184 = scmp.ne.s32.totalorder %s176, %s179
      %p185 = scmp.eq.s32.totalorder %s18, 0
      %p186 = por %p184, %p185
      %p187 = scmp.ne.s32.totalorder %s176, %s179
      %p188 = scmp.eq.s32.totalorder %s23, 2
      %p189 = por %p187, %p188
      %p190 = scmp.ne.s32.totalorder %s179, %s180
      %p191 = scmp.eq.s32.totalorder %s23, 0
      %p192 = por %p190, %p191
      %p193 = scmp.ne.s32.totalorder %s179, %s180
      %p194 = scmp.eq.s32.totalorder %s24, 2
      %p195 = por %p193, %p194
      %p197 = scmp.ne.s32.totalorder %s180, %s196
      %p198 = scmp.eq.s32.totalorder %s24, 0
      %p199 = por %p197, %p198
      %s200 = ssub.s32 %s25, %s37
      %s201 = ssub.s32 %s26, %s33
      %s202 = sor.u32 %s200, %s201
      %p203 = scmp.eq.s32.totalorder %s202, 0
      %s205 = sadd.s32 %s204, 1
      %s206 = scalar_select %p203, %s204, %s205
      %p209 = pneg %p203
      %p210 = scmp.eq.s32.totalorder %s18, 2
      %p211 = por %p209, %p210
      %p212 = scmp.ne.s32.totalorder %s204, %s207
      %p213 = scmp.eq.s32.totalorder %s18, 0
      %p214 = por %p212, %p213
      %p215 = scmp.ne.s32.totalorder %s204, %s207
      %p216 = scmp.eq.s32.totalorder %s23, 2
      %p217 = por %p215, %p216
      %p218 = scmp.ne.s32.totalorder %s207, %s208
      %p219 = scmp.eq.s32.totalorder %s23, 0
      %p220 = por %p218, %p219
      %p221 = scmp.ne.s32.totalorder %s207, %s208
      %p222 = scmp.eq.s32.totalorder %s24, 2
      %p223 = por %p221, %p222
      %p225 = scmp.ne.s32.totalorder %s208, %s224
      %p226 = scmp.eq.s32.totalorder %s24, 0
      %p227 = por %p225, %p226
      %p228 = scmp.le.s32.totalorder 1, %s18
      %p229 = scmp.lt.s32.totalorder %s18, 4
      %p230 = pnand %p228, %p229
      %p231 = pneg %p230
      // Predicated region
      $region9: #{tpu_custom_call.1} parent=5 // pred_check
        _
      $region10: #{tpu_custom_call.1} parent=5 // pred_check_branch
        %233 = sbr.rel (%p230) target = $region12
      $region11: #{tpu_custom_call.1} parent=5 // pred_region
        %s234 = ssub.s32 %s18, 1
        // Predicated region
        $region13: #{tpu_custom_call.1} parent=11 // pred_check
          %p235 = pneg %p56
        $region14: #{tpu_custom_call.1} parent=11 // pred_check_branch
          %237 = sbr.rel (%p235) target = $region16
        $region15: #{tpu_custom_call.1} parent=11 // pred_region
          %s238 = smul.u32 2, %s27
          %s240 = ssub.s32 128, 128
          %241 = vsyncadd [#allocation4], %s240
          %s242 = smul.addr %s238, 64
          %s243 = scalar_lea.hbm %s0, %s242
          %s244 = sshll.u32 [#allocation3], 4
          %s245 = int_to_ptr.vmem [resolvable:$true] %s244
          %250 = dma.hbm_to_vmem [thread:$0]  %s243, 128, %s245, [#allocation4], 64, 64, 4
        $region16: #{tpu_custom_call.1} parent=11 // pred_fallthru
          _
        // Predicated region
        $region17: #{tpu_custom_call.1} parent=11 // pred_check
          %p251 = pneg %p77
        $region18: #{tpu_custom_call.1} parent=11 // pred_check_branch
          %253 = sbr.rel (%p251) target = $region20
        $region19: #{tpu_custom_call.1} parent=11 // pred_region
          %s255 = ssub.s32 256, 256
          %256 = vsyncadd [#allocation7], %s255
          %s257 = sshll.u32 [#allocation6], 4
          %s258 = int_to_ptr.vmem [resolvable:$true] %s257
          %263 = dma.hbm_to_vmem [thread:$0]  %s1, 256, %s258, [#allocation7], 64, 64, 4
        $region20: #{tpu_custom_call.1} parent=11 // pred_fallthru
          _
        // Predicated region
        $region21: #{tpu_custom_call.1} parent=11 // pred_check
          %p264 = pneg %p98
        $region22: #{tpu_custom_call.1} parent=11 // pred_check_branch
          %266 = sbr.rel (%p264) target = $region24
        $region23: #{tpu_custom_call.1} parent=11 // pred_region
          _
        $region24: #{tpu_custom_call.1} parent=11 // pred_fallthru
          _
        // Predicated region
        $region25: #{tpu_custom_call.1} parent=11 // pred_check
          %p267 = pneg %p119
        $region26: #{tpu_custom_call.1} parent=11 // pred_check_branch
          %269 = sbr.rel (%p267) target = $region28
        $region27: #{tpu_custom_call.1} parent=11 // pred_region
          _
        $region28: #{tpu_custom_call.1} parent=11 // pred_fallthru
          _
        // Predicated region
        $region29: #{tpu_custom_call.1} parent=11 // pred_check
          %p270 = pneg %p140
        $region30: #{tpu_custom_call.1} parent=11 // pred_check_branch
          %272 = sbr.rel (%p270) target = $region32
        $region31: #{tpu_custom_call.1} parent=11 // pred_region
          _
        $region32: #{tpu_custom_call.1} parent=11 // pred_fallthru
          _
      $region12: #{tpu_custom_call.1} parent=5 // pred_fallthru
        _
      %p273 = scmp.lt.s32.totalorder %s18, 3
      // Predicated region
      $region33: #{tpu_custom_call.1} parent=5 // pred_check
        %p274 = pneg %p273
      $region34: #{tpu_custom_call.1} parent=5 // pred_check_branch
        %276 = sbr.rel (%p274) target = $region36
      $region35: #{tpu_custom_call.1} parent=5 // pred_region
        // Predicated region
        $region37: #{tpu_custom_call.1} parent=35 // pred_check
          %p277 = pneg %p160
        $region38: #{tpu_custom_call.1} parent=35 // pred_check_branch
          %279 = sbr.rel (%p277) target = $region40
        $region39: #{tpu_custom_call.1} parent=35 // pred_region
          %s280 = sand.u32 %s18, 1
          %s281 = scalar_lea.sflag [#allocation4], %s280
          %s282 = sand.u32 %s150, 1
          %s283 = smul.addr %s282, 16
          %s284 = scalar_lea.vmem [#allocation8], %s283
          %s286 = ssub.s32 256, 256
          %287 = vsyncadd %s281, %s286
          %s288 = smul.addr %s26, 64
          %s289 = scalar_lea.hbm %s5, %s288
          %s290 = sshll.u32 %s284, 4
          %s291 = int_to_ptr.vmem [resolvable:$true] %s290
          %296 = dma.hbm_to_vmem [thread:$0]  %s289, 256, %s291, %s281, 192, 64, 4
        $region40: #{tpu_custom_call.1} parent=35 // pred_fallthru
          _
        // Predicated region
        $region41: #{tpu_custom_call.1} parent=35 // pred_check
          %p297 = pneg %p186
        $region42: #{tpu_custom_call.1} parent=35 // pred_check_branch
          %299 = sbr.rel (%p297) target = $region44
        $region43: #{tpu_custom_call.1} parent=35 // pred_region
          %p300 = scmp.lt.s32.totalorder %s26, 2
          %s301 = scalar_select %p300, %s26, 2
          %s302 = scalar_lea.vmem %s6, %s301
        $region44: #{tpu_custom_call.1} parent=35 // pred_fallthru
          _
      $region36: #{tpu_custom_call.1} parent=5 // pred_fallthru
        _
      %p303 = scmp.le.s32.totalorder 1, %s18
      %p304 = scmp.lt.s32.totalorder %s18, 4
      %p305 = pnand %p303, %p304
      %p306 = pneg %p305
      // Predicated region
      $region45: #{tpu_custom_call.1} parent=5 // pred_check
        _
      $region46: #{tpu_custom_call.1} parent=5 // pred_check_branch
        %308 = sbr.rel (%p305) target = $region48
      $region47: #{tpu_custom_call.1} parent=5 // pred_region
        %s309 = ssub.s32 %s18, 1
        // Predicated region
        $region49: #{tpu_custom_call.1} parent=47 // pred_check
          %p310 = pneg %p56
        $region50: #{tpu_custom_call.1} parent=47 // pred_check_branch
          %312 = sbr.rel (%p310) target = $region52
        $region51: #{tpu_custom_call.1} parent=47 // pred_region
          %313 = dma.done [#allocation4], 128
        $region52: #{tpu_custom_call.1} parent=47 // pred_fallthru
          _
        // Predicated region
        $region53: #{tpu_custom_call.1} parent=47 // pred_check
          %p314 = pneg %p77
        $region54: #{tpu_custom_call.1} parent=47 // pred_check_branch
          %316 = sbr.rel (%p314) target = $region56
        $region55: #{tpu_custom_call.1} parent=47 // pred_region
          %317 = dma.done [#allocation7], 256
        $region56: #{tpu_custom_call.1} parent=47 // pred_fallthru
          _
        %s318 = sand.u32 %s23, 1
        %s319 = scalar_lea.sflag [#allocation4], %s318
        %s320 = sand.u32 %s153, 1
        %s321 = smul.addr %s320, 16
        %s322 = scalar_lea.vmem [#allocation8], %s321
        // Predicated region
        $region57: #{tpu_custom_call.1} parent=47 // pred_check
          %p323 = pneg %p166
        $region58: #{tpu_custom_call.1} parent=47 // pred_check_branch
          %325 = sbr.rel (%p323) target = $region60
        $region59: #{tpu_custom_call.1} parent=47 // pred_region
          %326 = dma.done %s319, 256
        $region60: #{tpu_custom_call.1} parent=47 // pred_fallthru
          _
        %p327 = pneg %p56
        %p328 = pneg %p53
        %p329 = pneg %p77
        %p330 = pneg %p74
        %p331 = pneg %p98
        %p332 = pneg %p95
        %p333 = pneg %p119
        %p334 = pneg %p116
        %p335 = pneg %p140
        %p336 = pneg %p137
        %s337 = sand.u32 %s23, 1
        %s338 = scalar_lea.sflag [#allocation4], %s337
        %s339 = sand.u32 %s153, 1
        %s340 = smul.addr %s339, 16
        %s341 = scalar_lea.vmem [#allocation8], %s340
        %p342 = pneg %p166
        %p343 = pneg %p163
        %p344 = scmp.lt.s32.totalorder %s28, 2
        %s345 = scalar_select %p344, %s28, 2
        %s346 = scalar_lea.vmem %s6, %s345
        %p347 = pneg %p192
        %p348 = pneg %p189
        %p349 = pneg %p220
        %p350 = pneg %p217
        %s351 = sand.u32 %s207, 1
        %s352 = scalar_lea.sflag [#allocation5], %s351
        %s353 = sand.u32 %s207, 1
        %s354 = smul.addr %s353, 16
        %s355 = scalar_lea.vmem [#allocation9], %s354
        %s356 = smul.u32 2, %s27
        %p357 = scmp.lt.s32.totalorder %s28, 2
        %s358 = scalar_select %p357, %s28, 2
        %s359 = scalar_lea.vmem %s6, %s358
        %s360 = smul.u32 2, %s27
        %p362 = scmp.eq.s32.totalorder %s28, 0
        // Predicated region
        $region61: #{tpu_custom_call.1} parent=47 // pred_check
          %p363 = pneg %p362
        $region62: #{tpu_custom_call.1} parent=47 // pred_check_branch
          %365 = sbr.rel (%p363) target = $region64
        $region63: #{tpu_custom_call.1} parent=47 // pred_region
          %v366 = vld [vmem:[#allocation3] sm:$0xf]
          %v367 = vld [vmem:[#allocation3 + $0x4] sm:$0xf]
          %v368 = vld [vmem:[#allocation6] sm:$0xf]
          %v369 = vld [vmem:[#allocation6 + $0x4] sm:$0xf]
          %v370 = vld [vmem:[#allocation6 + $0x8] sm:$0xf]
          %v371 = vld [vmem:[#allocation6 + $0xc] sm:$0xf]
          %v372 = vld [vmem:[%s2] sm:$0x1]
          %v374 = vlaneseq
          %v375 = vshrl.u32 %v374, 7
          %v376 = vsub.s32 0, %v375
          %v377 = vrot.slane %v372, %v376
          %v381 = vunpack.c.l.b16 %v366
          %v382 = vunpack.c.l.b16 %v367
          %v383 = vpack.c.b16 %v382, %v381
          %v388 = vunpack.c.l.b16 %v368
          %v389 = vunpack.c.l.b16 %v369
          %v390 = vunpack.c.l.b16 %v370
          %v391 = vunpack.c.l.b16 %v371
          %v392 = vpack.c.b16 %v389, %v388
          %v393 = vpack.c.b16 %v391, %v390
          %vm396 = vcmask 261120
          %v398 = vsel %vm396, %v383, 0
          %400 = vmatprep.subr.bf16.mxu0 0
          %401 = vmatpush1.bf16.msra.mxu0 0
          %402 = vmatprep.subr.bf16.mxu0 0
          %403 = vmatpush1.bf16.msra.mxu0 0
          %404 = vmatprep.subr.bf16.mxu0 0
          %405 = vmatpush1.bf16.msra.mxu0 0
          %406 = vmatprep.subr.bf16.mxu0 0
          %407 = vmatpush1.bf16.msra.mxu0 0
          %408 = vmatprep.subr.bf16.mxu0 0
          %409 = vmatpush1.bf16.msra.mxu0 0
          %410 = vmatprep.subr.bf16.mxu0 0
          %411 = vmatpush1.bf16.msra.mxu0 0
          %412 = vmatprep.subr.bf16.mxu0 0
          %413 = vmatpush1.bf16.msra.mxu0 %v393
          %414 = vmatprep.subr.bf16.mxu0 0
          %415 = vmatpush1.bf16.msra.mxu0 %v392
          %416 = vmatprep.subr.bf16.mxu0 0
          %417 = vmatpush2.bf16.msra.mxu0 0
          %418 = vmatprep.subr.bf16.mxu0 0
          %419 = vmatpush2.bf16.msra.mxu0 0
          %420 = vmatprep.subr.bf16.mxu0 0
          %421 = vmatpush2.bf16.msra.mxu0 0
          %422 = vmatprep.subr.bf16.mxu0 0
          %423 = vmatpush2.bf16.msra.mxu0 0
          %424 = vmatprep.subr.bf16.mxu0 0
          %425 = vmatpush2.bf16.msra.mxu0 0
          %426 = vmatprep.subr.bf16.mxu0 0
          %427 = vmatpush2.bf16.msra.mxu0 0
          %428 = vmatprep.subr.bf16.mxu0 0
          %429 = vmatpush2.bf16.msra.mxu0 0
          %430 = vmatprep.subr.bf16.mxu0 0
          %431 = vmatpush2.bf16.msra.mxu0 0
          %432 = vmatprep.mubr.bf16.mxu0 0
          %433 = vmatmul.mubr.bf16.gmra.mxu0 %v398
          %v434 = vpop.f32.mrf.mxu0
          %v435 = vadd.f32 %v377, %v434
          %v436 = vpop.f32.mrf.mxu0
          %v437 = vpop.f32.mrf.mxu0
          %v438 = vadd.f32 %v377, %v437
          %v439 = vpop.f32.mrf.mxu0
          %440 = vdwg.mxu0
          %v441 = vmul.f32 %v435, 0.5
          %v442 = vmul.f32 %v438, 0.5
          %v443 = vmul.f32 %v435, 0.70710677
          %v444 = vmul.f32 %v438, 0.70710677
          %v445 = verf.f32.pop %v443
          %v446 = verf.f32.pop %v444
          %v447 = vadd.f32 %v445, 1.0
          %v448 = vadd.f32 %v446, 1.0
          %v449 = vmul.f32 %v441, %v447
          %v450 = vmul.f32 %v442, %v448
          %v451 = vsel %vm396, %v449, 0.0
          %452 = vadd.xlane.f32.xlu0 %v451
          %v453 = vpop.xlane.xlu0 %452
          %v454 = vsel %vm396, %v450, 0.0
          %455 = vadd.xlane.f32.xlu0 %v454
          %v456 = vpop.xlane.xlu0 %455
          %v457 = vrcp.pop 32.0
          %v458 = vmul.f32 %v453, %v457
          %v459 = vmul.f32 %v456, %v457
          %v460 = vsub.f32 %v449, %v458
          %v461 = vsub.f32 %v450, %v459
          %v462 = vmul.f32 %v460, %v460
          %v463 = vmul.f32 %v461, %v461
          %v464 = vsel %vm396, %v462, 0.0
          %465 = vadd.xlane.f32.xlu0 %v464
          %v466 = vpop.xlane.xlu0 %465
          %v467 = vsel %vm396, %v463, 0.0
          %468 = vadd.xlane.f32.xlu0 %v467
          %v469 = vpop.xlane.xlu0 %468
          %v470 = vmul.f32 %v466, %v457
          %v471 = vmul.f32 %v469, %v457
          %v472 = vadd.f32 %v470, 1e-12
          %v473 = vadd.f32 %v471, 1e-12
          %v474 = vrsqrt.pop %v472
          %v475 = vrsqrt.pop %v473
          %v476 = vmul.f32 %v460, %v474
          %v477 = vmul.f32 %v461, %v475
          %v478 = vld [vmem:[%s3] sm:$0x1]
          %v480 = vlaneseq
          %v481 = vshrl.u32 %v480, 7
          %v482 = vsub.s32 0, %v481
          %v483 = vrot.slane %v478, %v482
          %v485 = vmul.f32 %v476, %v483
          %v486 = vmul.f32 %v477, %v483
          %v487 = vld [vmem:[%s4] sm:$0x1]
          %v489 = vlaneseq
          %v490 = vshrl.u32 %v489, 7
          %v491 = vsub.s32 0, %v490
          %v492 = vrot.slane %v487, %v491
          %v494 = vadd.f32 %v485, %v492
          %v495 = vadd.f32 %v486, %v492
          %v496 = vpack.c.bf16 %v495, %v494
          %v498 = vunpack.c.l.b16 %v496
          %v499 = vunpack.c.h.b16 %v496
          %v500 = vpack.c.b16 %v498, %v498
          %v501 = vpack.c.b16 %v499, %v499
          %vm504 = vcmask 257024
          %505 = vst.msk [vmem:[#allocation2] sm:$0xf] %vm504, %v500
          %506 = vst.msk [vmem:[#allocation2 + $0x4] sm:$0xf] %vm504, %v501
        $region64: #{tpu_custom_call.1} parent=47 // pred_fallthru
          _
        %v507 = vld [vmem:[#allocation2] sm:$0xf]
        %v508 = vld [vmem:[#allocation2 + $0x4] sm:$0xf]
        %v509 = vld [vmem:[%s322] sm:$0xf]
        %v510 = vld [vmem:[%s322 + $0x4] sm:$0xf]
        %v511 = vld [vmem:[%s322 + $0x8] sm:$0xf]
        %v512 = vld [vmem:[%s322 + $0xc] sm:$0xf]
        %v513 = vld [vmem:[%s359] sm:$0x1]
        %v515 = vlaneseq
        %v516 = vshrl.u32 %v515, 7
        %v517 = vsub.s32 0, %v516
        %v518 = vrot.slane %v513, %v517
        %v522 = vunpack.c.l.b16 %v507
        %v523 = vunpack.c.l.b16 %v508
        %v524 = vpack.c.b16 %v523, %v522
        %v529 = vunpack.c.l.b16 %v509
        %v530 = vunpack.c.l.b16 %v510
        %v531 = vunpack.c.l.b16 %v511
        %v532 = vunpack.c.l.b16 %v512
        %v533 = vpack.c.b16 %v530, %v529
        %v534 = vpack.c.b16 %v532, %v531
        %vm537 = vcmask 261120
        %v539 = vsel %vm537, %v524, 0
        %541 = vmatprep.subr.bf16.mxu0 0
        %542 = vmatpush1.bf16.msra.mxu0 0
        %543 = vmatprep.subr.bf16.mxu0 0
        %544 = vmatpush1.bf16.msra.mxu0 0
        %545 = vmatprep.subr.bf16.mxu0 0
        %546 = vmatpush1.bf16.msra.mxu0 0
        %547 = vmatprep.subr.bf16.mxu0 0
        %548 = vmatpush1.bf16.msra.mxu0 0
        %549 = vmatprep.subr.bf16.mxu0 0
        %550 = vmatpush1.bf16.msra.mxu0 0
        %551 = vmatprep.subr.bf16.mxu0 0
        %552 = vmatpush1.bf16.msra.mxu0 0
        %553 = vmatprep.subr.bf16.mxu0 0
        %554 = vmatpush1.bf16.msra.mxu0 %v534
        %555 = vmatprep.subr.bf16.mxu0 0
        %556 = vmatpush1.bf16.msra.mxu0 %v533
        %557 = vmatprep.subr.bf16.mxu0 0
        %558 = vmatpush2.bf16.msra.mxu0 0
        %559 = vmatprep.subr.bf16.mxu0 0
        %560 = vmatpush2.bf16.msra.mxu0 0
        %561 = vmatprep.subr.bf16.mxu0 0
        %562 = vmatpush2.bf16.msra.mxu0 0
        %563 = vmatprep.subr.bf16.mxu0 0
        %564 = vmatpush2.bf16.msra.mxu0 0
        %565 = vmatprep.subr.bf16.mxu0 0
        %566 = vmatpush2.bf16.msra.mxu0 0
        %567 = vmatprep.subr.bf16.mxu0 0
        %568 = vmatpush2.bf16.msra.mxu0 0
        %569 = vmatprep.subr.bf16.mxu0 0
        %570 = vmatpush2.bf16.msra.mxu0 0
        %571 = vmatprep.subr.bf16.mxu0 0
        %572 = vmatpush2.bf16.msra.mxu0 0
        %573 = vmatprep.mubr.bf16.mxu0 0
        %574 = vmatmul.mubr.bf16.gmra.mxu0 %v539
        %v575 = vpop.f32.mrf.mxu0
        %v576 = vadd.f32 %v518, %v575
        %v577 = vpop.f32.mrf.mxu0
        %v578 = vpop.f32.mrf.mxu0
        %v579 = vadd.f32 %v518, %v578
        %v580 = vpop.f32.mrf.mxu0
        %581 = vdwg.mxu0
        %582 = vst [vmem:[%s355] sm:$0xff] %v576
        %583 = vst [vmem:[%s355 + $0x8] sm:$0xff] %v579
        %s584 = sand.u32 %s207, 1
        %s585 = scalar_lea.sflag [#allocation5], %s584
        %s586 = sand.u32 %s207, 1
        %s587 = smul.addr %s586, 16
        %s588 = scalar_lea.vmem [#allocation9], %s587
        // Predicated region
        $region65: #{tpu_custom_call.1} parent=47 // pred_check
          %p589 = pneg %p217
        $region66: #{tpu_custom_call.1} parent=47 // pred_check_branch
          %591 = sbr.rel (%p589) target = $region68
        $region67: #{tpu_custom_call.1} parent=47 // pred_region
          %s592 = smul.u32 2, %s27
          %s594 = ssub.s32 256, 256
          %595 = vsyncadd %s585, %s594
          %s596 = smul.addr %s592, 3
          %s597 = sadd.s32 %s28, %s596
          %s598 = smul.addr %s597, 128
          %s599 = scalar_lea.hbm %s7, %s598
          %s600 = sshll.u32 %s588, 4
          %s601 = int_to_ptr.vmem [resolvable:$true] %s600
          %606 = dma.vmem_to_hbm [thread:$0]  %s601, 256, %s599, %s585, 128, 384, 8
        $region68: #{tpu_custom_call.1} parent=47 // pred_fallthru
          _
      $region48: #{tpu_custom_call.1} parent=5 // pred_fallthru
        _
      %p607 = scmp.le.s32.totalorder 2, %s18
      // Predicated region
      $region69: #{tpu_custom_call.1} parent=5 // pred_check
        %p608 = pneg %p607
      $region70: #{tpu_custom_call.1} parent=5 // pred_check_branch
        %610 = sbr.rel (%p608) target = $region72
      $region71: #{tpu_custom_call.1} parent=5 // pred_region
        %s611 = ssub.s32 %s18, 2
        // Predicated region
        $region73: #{tpu_custom_call.1} parent=71 // pred_check
          %p612 = pneg %p223
        $region74: #{tpu_custom_call.1} parent=71 // pred_check_branch
          %614 = sbr.rel (%p612) target = $region76
        $region75: #{tpu_custom_call.1} parent=71 // pred_region
          %s615 = sand.u32 %s208, 1
          %s616 = scalar_lea.sflag [#allocation5], %s615
          %s617 = sand.u32 %s208, 1
          %s618 = smul.addr %s617, 16
          %s619 = scalar_lea.vmem [#allocation9], %s618
          %620 = dma.done %s616, 256
        $region76: #{tpu_custom_call.1} parent=71 // pred_fallthru
          _
      $region72: #{tpu_custom_call.1} parent=5 // pred_fallthru
        _
    $region6: #{tpu_custom_call.1} parent=1 // loop_footer
      %s22 = sadd.s32 1, %s18
    $region7: #{tpu_custom_call.1} parent=1 // loop_footer_branch
      %17 = sbr.rel target = $region3
    $region8: #{tpu_custom_call.1} parent=1 // loop_exit
      _
    %621 = vsyncpa [#allocation4], 1
    %s622 = scalar_lea.sflag [#allocation4], 1
    %623 = vsyncpa %s622, 1
    %624 = vsyncpa [#allocation7], 1
    %625 = vsyncpa [#allocation5], 1
    %s626 = scalar_lea.sflag [#allocation5], 1
    %627 = vsyncpa %s626, 1

</llo_original>
